<compile_context>
chip_gen: v5e
topology: v5e:2x2
jax: 0.10.0
libtpu: 0.0.40
codegen_flags: <defaults>
</compile_context>

<pallas_src>
import jax
import jax.numpy as jnp
from jax.experimental import pallas as pl
from jax.experimental.pallas import tpu as pltpu


def make_tagger_kernel(T, Bblk):
    """Kernel for one batch block: static sequence length T, batch block Bblk."""

    def kernel(emb_ref, wih_ref, whh_ref, b_ref, wfc_ref, bfc_ref,
               out_ref, slab_ref):
        """
        emb_ref  : (T*Bblk, E)   embedded tokens, time-major within the block
        wih_ref  : (E, Hp)       W_ih^T, hidden zero-padded to Hp
        whh_ref  : (Hp, Hp)      W_hh^T, zero-padded
        b_ref    : (1, Hp)       b_ih + b_hh, zero-padded
        wfc_ref  : (Hp, Cp)      W_fc^T, zero-padded
        bfc_ref  : (1, Cp)       b_fc, padded classes get -1e9 (softmax -> ~0)
        out_ref  : (T*Bblk, Cp)  softmax probabilities, time-major in block
        slab_ref : (T*Bblk, Hp)  scratch: input projection, overwritten in
                                 place by the hidden states
        """
        Hp = slab_ref.shape[-1]

        # ---- 1) Hoisted input projection: ONE MXU matmul for the whole
        #         block, one contiguous lane-dense store into the slab.
        slab_ref[...] = (
            jnp.dot(emb_ref[...], wih_ref[...],
                    preferred_element_type=jnp.float32)
            + b_ref[...])

        # Hold W_hh^T in vregs across the (short, unrolled) recurrence.
        whh = whh_ref[...]

        # ---- 2) Serial recurrence. Hidden state lives in the loop carry; the
        #         per-step memory traffic is one aligned (Bblk, Hp) full-tile
        #         load and one aligned full-tile store (no masked scatters).
        def step(t, h_prev):
            start = pl.multiple_of(t * Bblk, Bblk)        # multiple of 8
            x_t = slab_ref[pl.ds(start, Bblk), :]         # (Bblk, Hp)
            h = jnp.tanh(
                x_t + jnp.dot(h_prev, whh,
                              preferred_element_type=jnp.float32))
            slab_ref[pl.ds(start, Bblk), :] = h           # overwrite xproj rows
            return h

        h0 = jnp.zeros((Bblk, Hp), jnp.float32)   # nn.RNN default h0 = 0
        # TODO(synk): switch to a bounded partial unroll (e.g. unroll=8) once T grows.
        jax.lax.fori_loop(0, T, step, h0, unroll=True)

        # ---- 3) Hoisted Linear + softmax over the whole slab; single
        #         lane-dense (128-wide) store of the block's output.
        logits = (jnp.dot(slab_ref[...], wfc_ref[...],
                          preferred_element_type=jnp.float32)
                  + bfc_ref[...])                           # (T*Bblk, Cp)
        m = jnp.max(logits, axis=-1, keepdims=True)
        e = jnp.exp(logits - m)
        out_ref[...] = e / jnp.sum(e, axis=-1, keepdims=True)   # exact division

    return kernel


def tagger_forward(X, params, *, batch_block=8):
    """X: int32 (B, T) token ids. Returns (B*T, ntags) softmax probs (PyTorch order)."""
    E_tbl = params["E"]           # (nwords, emb_dim)
    W_ih = params["W_ih"]         # (hidden, emb)
    W_hh = params["W_hh"]         # (hidden, hidden)
    b_ih = params["b_ih"]         # (hidden,)
    b_hh = params["b_hh"]         # (hidden,)
    W_fc = params["W_fc"]         # (ntags, hidden)
    b_fc = params["b_fc"]         # (ntags,)

    B, T = X.shape
    E = E_tbl.shape[1]
    H = W_hh.shape[0]
    C = W_fc.shape[0]

    f32 = jnp.float32
    rup = lambda n, m: ((n + m - 1) // m) * m
    Hp = rup(H, 128)              # lane-pad hidden
    Cp = rup(C, 128)              # lane-pad classes (lane-dense output stores)
    Bblk = batch_block            # sublane-pad batch block (8 => aligned tiles)
    nblk = pl.cdiv(B, Bblk)
    Bp = nblk * Bblk

    # ---- zero-padded weights. Exactness argument:
    #   * padded hidden lanes: Wih/b columns are 0 and Whh rows/cols are 0, so
    #     those lanes stay tanh(0) = 0 through the whole recurrence.
    #   * padded class lanes: Wfc columns 0, bias -1e9 -> softmax prob ~0; real
    #     class probabilities are unchanged and sliced out below.
    wih_t = jnp.zeros((E, Hp), f32).at[:, :H].set(W_ih.T)
    whh_t = jnp.zeros((Hp, Hp), f32).at[:H, :H].set(W_hh.T)
    b_rnn = jnp.zeros((1, Hp), f32).at[0, :H].set(b_ih + b_hh)
    wfc_t = jnp.zeros((Hp, Cp), f32).at[:H, :C].set(W_fc.T)
    bfc_p = jnp.full((1, Cp), -1e9, f32).at[0, :C].set(b_fc)

    # ---- embedding gather in the JAX glue, laid out block-major /
    #      time-major-within-block: flat row (blk*T + t)*Bblk + b_in holds the
    #      embedding of token X[blk*Bblk + b_in, t].  Padded batch rows reuse
    #      token 0; their results are finite garbage and are sliced off.
    Xp = jnp.pad(X, ((0, Bp - B), (0, 0)))
    ids = jnp.transpose(Xp.reshape(nblk, Bblk, T), (0, 2, 1)).reshape(-1)
    emb = jnp.take(E_tbl, ids, axis=0).astype(f32)          # (nblk*T*Bblk, E)

    out = pl.pallas_call(
        make_tagger_kernel(T, Bblk),
        out_shape=jax.ShapeDtypeStruct((nblk * T * Bblk, Cp), f32),
        grid_spec=pltpu.PrefetchScalarGridSpec(
            num_scalar_prefetch=0,
            grid=(nblk,),                               # independent batch blocks
            in_specs=[
                pl.BlockSpec((T * Bblk, E), lambda i: (i, 0)),   # emb block
                pl.BlockSpec((E, Hp), lambda i: (0, 0)),         # W_ih^T
                pl.BlockSpec((Hp, Hp), lambda i: (0, 0)),        # W_hh^T
                pl.BlockSpec((1, Hp), lambda i: (0, 0)),         # b_ih+b_hh
                pl.BlockSpec((Hp, Cp), lambda i: (0, 0)),        # W_fc^T
                pl.BlockSpec((1, Cp), lambda i: (0, 0)),         # b_fc (padded)
            ],
            out_specs=pl.BlockSpec((T * Bblk, Cp), lambda i: (i, 0)),
            scratch_shapes=[pltpu.VMEM((T * Bblk, Hp), f32)],    # single reused slab
        ),
        compiler_params=pltpu.CompilerParams(
            dimension_semantics=("parallel",)),         # batch blocks -> both TCs on v7x
    )(emb, wih_t, whh_t, b_rnn, wfc_t, bfc_p)

    # ---- tiny wrapper-side reorder to PyTorch's batch-major view order
    #      (b*T + t), dropping batch and class padding.
    probs = jnp.transpose(out.reshape(nblk, T, Bblk, Cp), (0, 2, 1, 3))
    probs = probs.reshape(Bp, T, Cp)[:B, :, :C].reshape(B * T, C)
    return probs


def reference_forward(X, params):
    """Plain-JAX reference matching PyTorch semantics, for sanity checking."""
    emb = jnp.take(params["E"], X, axis=0)            # (B, T, emb)
    B, T, _ = emb.shape
    H = params["W_hh"].shape[0]

    def step(h, x_t):
        h = jnp.tanh(x_t @ params["W_ih"].T + params["b_ih"]
                     + h @ params["W_hh"].T + params["b_hh"])
        return h, h

    h0 = jnp.zeros((B, H), jnp.float32)
    _, ys = jax.lax.scan(step, h0, jnp.transpose(emb, (1, 0, 2)))   # (T, B, H)
    yhat = jnp.transpose(ys, (1, 0, 2))                              # (B, T, H)
    logits = yhat @ params["W_fc"].T + params["b_fc"]
    probs = jax.nn.softmax(logits, axis=2)
    return probs.reshape(B * T, -1)


if __name__ == "__main__":
    # model hyper-params (mirror TaggerModel.__init__ shapes)
    nwords, ntags, emb_dim, hidden_dim = 100, 10, 32, 32
    B, T = 2, 8

    key = jax.random.PRNGKey(0)
    keys = jax.random.split(key, 8)
    params = {
        "E":    0.1 * jax.random.normal(keys[0], (nwords, emb_dim), jnp.float32),
        "W_ih": 0.1 * jax.random.normal(keys[1], (hidden_dim, emb_dim), jnp.float32),
        "W_hh": 0.1 * jax.random.normal(keys[2], (hidden_dim, hidden_dim), jnp.float32),
        "b_ih": 0.1 * jax.random.normal(keys[3], (hidden_dim,), jnp.float32),
        "b_hh": 0.1 * jax.random.normal(keys[4], (hidden_dim,), jnp.float32),
        "W_fc": 0.1 * jax.random.normal(keys[5], (ntags, hidden_dim), jnp.float32),
        "b_fc": 0.1 * jax.random.normal(keys[6], (ntags,), jnp.float32),
    }
    X = jax.random.randint(keys[7], (B, T), 0, nwords, dtype=jnp.int32)

    out = jax.block_until_ready(tagger_forward(X, params))
    ref = jax.block_until_ready(reference_forward(X, params))

    assert out.shape == (B * T, ntags)
    # Exact softmax division restored -> tight tolerance again.
    assert jnp.allclose(out, ref, atol=1e-5, rtol=1e-5), \
        float(jnp.max(jnp.abs(out - ref)))

    print("KERNEL_OK")
</pallas_src>

<mosaic_0001>
module attributes {stable_mosaic.version = 11 : i64} {
  func.func @kernel(%arg0: i32, %arg1: memref<64x32xf32, #tpu.memory_space<vmem>>, %arg2: memref<32x128xf32, #tpu.memory_space<vmem>>, %arg3: memref<128x128xf32, #tpu.memory_space<vmem>>, %arg4: memref<1x128xf32, #tpu.memory_space<vmem>>, %arg5: memref<128x128xf32, #tpu.memory_space<vmem>>, %arg6: memref<1x128xf32, #tpu.memory_space<vmem>>, %arg7: memref<64x128xf32, #tpu.memory_space<vmem>>, %arg8: memref<64x128xf32, #tpu.memory_space<vmem>>) attributes {dimension_semantics = [#tpu.dimension_semantics<parallel>], iteration_bounds = array<i64: 1>, scalar_prefetch = 0 : i64, scratch_operands = 1 : i64, tpu.core_type = #tpu.core_type<tc>, window_params = [{transform_indices = @transform_0, window_bounds = array<i64: 64, 32>}, {pipeline_mode = #tpu.pipeline_mode<synchronous>, transform_indices = @transform_1, window_bounds = array<i64: 32, 128>}, {pipeline_mode = #tpu.pipeline_mode<synchronous>, transform_indices = @transform_2, window_bounds = array<i64: 128, 128>}, {pipeline_mode = #tpu.pipeline_mode<synchronous>, transform_indices = @transform_3, window_bounds = array<i64: 1, 128>}, {pipeline_mode = #tpu.pipeline_mode<synchronous>, transform_indices = @transform_4, window_bounds = array<i64: 128, 128>}, {pipeline_mode = #tpu.pipeline_mode<synchronous>, transform_indices = @transform_5, window_bounds = array<i64: 1, 128>}, {transform_indices = @transform_6, window_bounds = array<i64: 64, 128>}]} {
    %c0 = arith.constant 0 : index
    %c0_0 = arith.constant 0 : index
    %0 = vector.load %arg1[%c0, %c0_0] : memref<64x32xf32, #tpu.memory_space<vmem>>, vector<64x32xf32>
    %c0_1 = arith.constant 0 : index
    %c0_2 = arith.constant 0 : index
    %1 = vector.load %arg2[%c0_1, %c0_2] : memref<32x128xf32, #tpu.memory_space<vmem>>, vector<32x128xf32>
    %cst = arith.constant dense<0.000000e+00> : vector<64x128xf32>
    %2 = tpu.matmul %0, %1, %cst {dimension_numbers = #tpu.dot_dimension_numbers<[1], [0], [0], [1], [0, 0, 1, 1], [], []>} : vector<64x32xf32>, vector<32x128xf32>, vector<64x128xf32> -> vector<64x128xf32>
    %c0_3 = arith.constant 0 : index
    %c0_4 = arith.constant 0 : index
    %3 = vector.load %arg4[%c0_3, %c0_4] : memref<1x128xf32, #tpu.memory_space<vmem>>, vector<1x128xf32>
    %4 = vector.broadcast %3 : vector<1x128xf32> to vector<64x128xf32>
    %5 = arith.addf %2, %4 : vector<64x128xf32>
    %c0_5 = arith.constant 0 : index
    %c0_6 = arith.constant 0 : index
    %6 = vector.load %arg8[%c0_5, %c0_6] : memref<64x128xf32, #tpu.memory_space<vmem>>, vector<64x128xf32>
    tpu.vector_store %arg8[%c0_5, %c0_6], %5 {strides = array<i32>} : memref<64x128xf32, #tpu.memory_space<vmem>>, vector<64x128xf32>,
    %c0_7 = arith.constant 0 : index
    %c0_8 = arith.constant 0 : index
    %7 = vector.load %arg3[%c0_7, %c0_8] : memref<128x128xf32, #tpu.memory_space<vmem>>, vector<128x128xf32>
    %cst_9 = arith.constant 0.000000e+00 : f32
    %8 = vector.broadcast %cst_9 : f32 to vector<8x128xf32>
    %c0_i32 = arith.constant 0 : i32
    %c8_i32 = arith.constant 8 : i32
    %9 = arith.muli %c0_i32, %c8_i32 : i32
    %10 = tpu.assume_multiple %9, 8 : i32
    %11 = arith.index_cast %10 : i32 to index
    %c0_10 = arith.constant 0 : index
    %12 = vector.load %arg8[%11, %c0_10] : memref<64x128xf32, #tpu.memory_space<vmem>>, vector<8x128xf32>
    %cst_11 = arith.constant dense<0.000000e+00> : vector<8x128xf32>
    %13 = tpu.matmul %8, %7, %cst_11 {dimension_numbers = #tpu.dot_dimension_numbers<[1], [0], [0], [1], [0, 0, 1, 1], [], []>} : vector<8x128xf32>, vector<128x128xf32>, vector<8x128xf32> -> vector<8x128xf32>
    %14 = arith.addf %12, %13 : vector<8x128xf32>
    %15 = math.tanh %14 : vector<8x128xf32>
    %16 = arith.index_cast %10 : i32 to index
    %c0_12 = arith.constant 0 : index
    %17 = vector.load %arg8[%16, %c0_12] : memref<64x128xf32, #tpu.memory_space<vmem>>, vector<8x128xf32>
    tpu.vector_store %arg8[%16, %c0_12], %15 {strides = array<i32>} : memref<64x128xf32, #tpu.memory_space<vmem>>, vector<8x128xf32>,
    %c1_i32 = arith.constant 1 : i32
    %c8_i32_13 = arith.constant 8 : i32
    %18 = arith.muli %c1_i32, %c8_i32_13 : i32
    %19 = tpu.assume_multiple %18, 8 : i32
    %20 = arith.index_cast %19 : i32 to index
    %c0_14 = arith.constant 0 : index
    %21 = vector.load %arg8[%20, %c0_14] : memref<64x128xf32, #tpu.memory_space<vmem>>, vector<8x128xf32>
    %cst_15 = arith.constant dense<0.000000e+00> : vector<8x128xf32>
    %22 = tpu.matmul %15, %7, %cst_15 {dimension_numbers = #tpu.dot_dimension_numbers<[1], [0], [0], [1], [0, 0, 1, 1], [], []>} : vector<8x128xf32>, vector<128x128xf32>, vector<8x128xf32> -> vector<8x128xf32>
    %23 = arith.addf %21, %22 : vector<8x128xf32>
    %24 = math.tanh %23 : vector<8x128xf32>
    %25 = arith.index_cast %19 : i32 to index
    %c0_16 = arith.constant 0 : index
    %26 = vector.load %arg8[%25, %c0_16] : memref<64x128xf32, #tpu.memory_space<vmem>>, vector<8x128xf32>
    tpu.vector_store %arg8[%25, %c0_16], %24 {strides = array<i32>} : memref<64x128xf32, #tpu.memory_space<vmem>>, vector<8x128xf32>,
    %c2_i32 = arith.constant 2 : i32
    %c8_i32_17 = arith.constant 8 : i32
    %27 = arith.muli %c2_i32, %c8_i32_17 : i32
    %28 = tpu.assume_multiple %27, 8 : i32
    %29 = arith.index_cast %28 : i32 to index
    %c0_18 = arith.constant 0 : index
    %30 = vector.load %arg8[%29, %c0_18] : memref<64x128xf32, #tpu.memory_space<vmem>>, vector<8x128xf32>
    %cst_19 = arith.constant dense<0.000000e+00> : vector<8x128xf32>
    %31 = tpu.matmul %24, %7, %cst_19 {dimension_numbers = #tpu.dot_dimension_numbers<[1], [0], [0], [1], [0, 0, 1, 1], [], []>} : vector<8x128xf32>, vector<128x128xf32>, vector<8x128xf32> -> vector<8x128xf32>
    %32 = arith.addf %30, %31 : vector<8x128xf32>
    %33 = math.tanh %32 : vector<8x128xf32>
    %34 = arith.index_cast %28 : i32 to index
    %c0_20 = arith.constant 0 : index
    %35 = vector.load %arg8[%34, %c0_20] : memref<64x128xf32, #tpu.memory_space<vmem>>, vector<8x128xf32>
    tpu.vector_store %arg8[%34, %c0_20], %33 {strides = array<i32>} : memref<64x128xf32, #tpu.memory_space<vmem>>, vector<8x128xf32>,
    %c3_i32 = arith.constant 3 : i32
    %c8_i32_21 = arith.constant 8 : i32
    %36 = arith.muli %c3_i32, %c8_i32_21 : i32
    %37 = tpu.assume_multiple %36, 8 : i32
    %38 = arith.index_cast %37 : i32 to index
    %c0_22 = arith.constant 0 : index
    %39 = vector.load %arg8[%38, %c0_22] : memref<64x128xf32, #tpu.memory_space<vmem>>, vector<8x128xf32>
    %cst_23 = arith.constant dense<0.000000e+00> : vector<8x128xf32>
    %40 = tpu.matmul %33, %7, %cst_23 {dimension_numbers = #tpu.dot_dimension_numbers<[1], [0], [0], [1], [0, 0, 1, 1], [], []>} : vector<8x128xf32>, vector<128x128xf32>, vector<8x128xf32> -> vector<8x128xf32>
    %41 = arith.addf %39, %40 : vector<8x128xf32>
    %42 = math.tanh %41 : vector<8x128xf32>
    %43 = arith.index_cast %37 : i32 to index
    %c0_24 = arith.constant 0 : index
    %44 = vector.load %arg8[%43, %c0_24] : memref<64x128xf32, #tpu.memory_space<vmem>>, vector<8x128xf32>
    tpu.vector_store %arg8[%43, %c0_24], %42 {strides = array<i32>} : memref<64x128xf32, #tpu.memory_space<vmem>>, vector<8x128xf32>,
    %c4_i32 = arith.constant 4 : i32
    %c8_i32_25 = arith.constant 8 : i32
    %45 = arith.muli %c4_i32, %c8_i32_25 : i32
    %46 = tpu.assume_multiple %45, 8 : i32
    %47 = arith.index_cast %46 : i32 to index
    %c0_26 = arith.constant 0 : index
    %48 = vector.load %arg8[%47, %c0_26] : memref<64x128xf32, #tpu.memory_space<vmem>>, vector<8x128xf32>
    %cst_27 = arith.constant dense<0.000000e+00> : vector<8x128xf32>
    %49 = tpu.matmul %42, %7, %cst_27 {dimension_numbers = #tpu.dot_dimension_numbers<[1], [0], [0], [1], [0, 0, 1, 1], [], []>} : vector<8x128xf32>, vector<128x128xf32>, vector<8x128xf32> -> vector<8x128xf32>
    %50 = arith.addf %48, %49 : vector<8x128xf32>
    %51 = math.tanh %50 : vector<8x128xf32>
    %52 = arith.index_cast %46 : i32 to index
    %c0_28 = arith.constant 0 : index
    %53 = vector.load %arg8[%52, %c0_28] : memref<64x128xf32, #tpu.memory_space<vmem>>, vector<8x128xf32>
    tpu.vector_store %arg8[%52, %c0_28], %51 {strides = array<i32>} : memref<64x128xf32, #tpu.memory_space<vmem>>, vector<8x128xf32>,
    %c5_i32 = arith.constant 5 : i32
    %c8_i32_29 = arith.constant 8 : i32
    %54 = arith.muli %c5_i32, %c8_i32_29 : i32
    %55 = tpu.assume_multiple %54, 8 : i32
    %56 = arith.index_cast %55 : i32 to index
    %c0_30 = arith.constant 0 : index
    %57 = vector.load %arg8[%56, %c0_30] : memref<64x128xf32, #tpu.memory_space<vmem>>, vector<8x128xf32>
    %cst_31 = arith.constant dense<0.000000e+00> : vector<8x128xf32>
    %58 = tpu.matmul %51, %7, %cst_31 {dimension_numbers = #tpu.dot_dimension_numbers<[1], [0], [0], [1], [0, 0, 1, 1], [], []>} : vector<8x128xf32>, vector<128x128xf32>, vector<8x128xf32> -> vector<8x128xf32>
    %59 = arith.addf %57, %58 : vector<8x128xf32>
    %60 = math.tanh %59 : vector<8x128xf32>
    %61 = arith.index_cast %55 : i32 to index
    %c0_32 = arith.constant 0 : index
    %62 = vector.load %arg8[%61, %c0_32] : memref<64x128xf32, #tpu.memory_space<vmem>>, vector<8x128xf32>
    tpu.vector_store %arg8[%61, %c0_32], %60 {strides = array<i32>} : memref<64x128xf32, #tpu.memory_space<vmem>>, vector<8x128xf32>,
    %c6_i32 = arith.constant 6 : i32
    %c8_i32_33 = arith.constant 8 : i32
    %63 = arith.muli %c6_i32, %c8_i32_33 : i32
    %64 = tpu.assume_multiple %63, 8 : i32
    %65 = arith.index_cast %64 : i32 to index
    %c0_34 = arith.constant 0 : index
    %66 = vector.load %arg8[%65, %c0_34] : memref<64x128xf32, #tpu.memory_space<vmem>>, vector<8x128xf32>
    %cst_35 = arith.constant dense<0.000000e+00> : vector<8x128xf32>
    %67 = tpu.matmul %60, %7, %cst_35 {dimension_numbers = #tpu.dot_dimension_numbers<[1], [0], [0], [1], [0, 0, 1, 1], [], []>} : vector<8x128xf32>, vector<128x128xf32>, vector<8x128xf32> -> vector<8x128xf32>
    %68 = arith.addf %66, %67 : vector<8x128xf32>
    %69 = math.tanh %68 : vector<8x128xf32>
    %70 = arith.index_cast %64 : i32 to index
    %c0_36 = arith.constant 0 : index
    %71 = vector.load %arg8[%70, %c0_36] : memref<64x128xf32, #tpu.memory_space<vmem>>, vector<8x128xf32>
    tpu.vector_store %arg8[%70, %c0_36], %69 {strides = array<i32>} : memref<64x128xf32, #tpu.memory_space<vmem>>, vector<8x128xf32>,
    %c7_i32 = arith.constant 7 : i32
    %c8_i32_37 = arith.constant 8 : i32
    %72 = arith.muli %c7_i32, %c8_i32_37 : i32
    %73 = tpu.assume_multiple %72, 8 : i32
    %74 = arith.index_cast %73 : i32 to index
    %c0_38 = arith.constant 0 : index
    %75 = vector.load %arg8[%74, %c0_38] : memref<64x128xf32, #tpu.memory_space<vmem>>, vector<8x128xf32>
    %cst_39 = arith.constant dense<0.000000e+00> : vector<8x128xf32>
    %76 = tpu.matmul %69, %7, %cst_39 {dimension_numbers = #tpu.dot_dimension_numbers<[1], [0], [0], [1], [0, 0, 1, 1], [], []>} : vector<8x128xf32>, vector<128x128xf32>, vector<8x128xf32> -> vector<8x128xf32>
    %77 = arith.addf %75, %76 : vector<8x128xf32>
    %78 = math.tanh %77 : vector<8x128xf32>
    %79 = arith.index_cast %73 : i32 to index
    %c0_40 = arith.constant 0 : index
    %80 = vector.load %arg8[%79, %c0_40] : memref<64x128xf32, #tpu.memory_space<vmem>>, vector<8x128xf32>
    tpu.vector_store %arg8[%79, %c0_40], %78 {strides = array<i32>} : memref<64x128xf32, #tpu.memory_space<vmem>>, vector<8x128xf32>,
    %c8_i32_41 = arith.constant 8 : i32
    %c0_42 = arith.constant 0 : index
    %c0_43 = arith.constant 0 : index
    %81 = vector.load %arg8[%c0_42, %c0_43] : memref<64x128xf32, #tpu.memory_space<vmem>>, vector<64x128xf32>
    %c0_44 = arith.constant 0 : index
    %c0_45 = arith.constant 0 : index
    %82 = vector.load %arg5[%c0_44, %c0_45] : memref<128x128xf32, #tpu.memory_space<vmem>>, vector<128x128xf32>
    %cst_46 = arith.constant dense<0.000000e+00> : vector<64x128xf32>
    %83 = tpu.matmul %81, %82, %cst_46 {dimension_numbers = #tpu.dot_dimension_numbers<[1], [0], [0], [1], [0, 0, 1, 1], [], []>} : vector<64x128xf32>, vector<128x128xf32>, vector<64x128xf32> -> vector<64x128xf32>
    %c0_47 = arith.constant 0 : index
    %c0_48 = arith.constant 0 : index
    %84 = vector.load %arg6[%c0_47, %c0_48] : memref<1x128xf32, #tpu.memory_space<vmem>>, vector<1x128xf32>
    %85 = vector.broadcast %84 : vector<1x128xf32> to vector<64x128xf32>
    %86 = arith.addf %83, %85 : vector<64x128xf32>
    %cst_49 = arith.constant dense<0xFF800000> : vector<64xf32>
    %87 = vector.multi_reduction <maximumf>, %86, %cst_49 [1] : vector<64x128xf32> to vector<64xf32>
    %88 = vector.shape_cast %87 : vector<64xf32> to vector<64x1xf32>
    %89 = vector.broadcast %88 : vector<64x1xf32> to vector<64x128xf32>
    %90 = arith.subf %86, %89 : vector<64x128xf32>
    %91 = math.exp %90 : vector<64x128xf32>
    %cst_50 = arith.constant dense<0.000000e+00> : vector<64xf32>
    %92 = vector.multi_reduction <add>, %91, %cst_50 [1] : vector<64x128xf32> to vector<64xf32>
    %93 = vector.shape_cast %92 : vector<64xf32> to vector<64x1xf32>
    %94 = vector.broadcast %93 : vector<64x1xf32> to vector<64x128xf32>
    %95 = arith.divf %91, %94 : vector<64x128xf32>
    %c0_51 = arith.constant 0 : index
    %c0_52 = arith.constant 0 : index
    %96 = vector.load %arg7[%c0_51, %c0_52] : memref<64x128xf32, #tpu.memory_space<vmem>>, vector<64x128xf32>
    tpu.vector_store %arg7[%c0_51, %c0_52], %95 {strides = array<i32>} : memref<64x128xf32, #tpu.memory_space<vmem>>, vector<64x128xf32>,
    return
  }
  func.func @transform_0(%arg0: i32) -> (i32, i32) {
    %c0_i32 = arith.constant 0 : i32
    %c0_i32_0 = arith.constant 0 : i32
    return %arg0, %c0_i32 : i32, i32
  }
  func.func @transform_1(%arg0: i32) -> (i32, i32) {
    %c0_i32 = arith.constant 0 : i32
    %c0_i32_0 = arith.constant 0 : i32
    %c0_i32_1 = arith.constant 0 : i32
    return %c0_i32, %c0_i32_0 : i32, i32
  }
  func.func @transform_2(%arg0: i32) -> (i32, i32) {
    %c0_i32 = arith.constant 0 : i32
    %c0_i32_0 = arith.constant 0 : i32
    %c0_i32_1 = arith.constant 0 : i32
    return %c0_i32, %c0_i32_0 : i32, i32
  }
  func.func @transform_3(%arg0: i32) -> (i32, i32) {
    %c0_i32 = arith.constant 0 : i32
    %c0_i32_0 = arith.constant 0 : i32
    %c0_i32_1 = arith.constant 0 : i32
    return %c0_i32, %c0_i32_0 : i32, i32
  }
  func.func @transform_4(%arg0: i32) -> (i32, i32) {
    %c0_i32 = arith.constant 0 : i32
    %c0_i32_0 = arith.constant 0 : i32
    %c0_i32_1 = arith.constant 0 : i32
    return %c0_i32, %c0_i32_0 : i32, i32
  }
  func.func @transform_5(%arg0: i32) -> (i32, i32) {
    %c0_i32 = arith.constant 0 : i32
    %c0_i32_0 = arith.constant 0 : i32
    %c0_i32_1 = arith.constant 0 : i32
    return %c0_i32, %c0_i32_0 : i32, i32
  }
  func.func @transform_6(%arg0: i32) -> (i32, i32) {
    %c0_i32 = arith.constant 0 : i32
    %c0_i32_0 = arith.constant 0 : i32
    return %arg0, %c0_i32 : i32, i32
  }
}

</mosaic_0001>

<llo_original>
// kernel: tpu_custom_call.1
$region0: #{tpu_custom_call.1}
  #allocation0 [shape = 'u32[]', space=smem, size = 0x4, offset = 0x4, fixed_abs, tag = 'smem constant byte address 0x4 - core index']
  #allocation1 [shape = 'u32[72,128]{1,0:T(1,128)}', space=vmem, size = 0x9000, scoped, tag = 'internal scratch']
  #allocation2 [shape = 'f32[64,128]{1,0:T(8,128)}', space=vmem, size = 0x8000, scoped, tag = 'scratch operand']
  %s0 = inlined_call_operand.vmem [shape: f32[64,32], index: 0, kind: input, shape index: {}]
  %s1 = inlined_call_operand.vmem [shape: f32[32,128], index: 1, kind: input, shape index: {}]
  %s2 = inlined_call_operand.hbm [shape: f32[128,128], index: 2, kind: input, shape index: {}]
  %s3 = inlined_call_operand.vmem [shape: f32[1,128], index: 3, kind: input, shape index: {}]
  %s4 = inlined_call_operand.hbm [shape: f32[128,128], index: 4, kind: input, shape index: {}]
  %s5 = inlined_call_operand.vmem [shape: f32[1,128], index: 5, kind: input, shape index: {}]
  %s6 = inlined_call_operand.hbm [shape: f32[64,128], index: 6, kind: output, shape index: {}]
  %s7 = sld [smem:[#allocation0]]
  $region42: #{tpu_custom_call.1} parent=0
    _
  %s9 = ssub.s32 1, %s7
  %s10 = scalar_select 0, %s9, %s7
  $region1: #{tpu_custom_call.1} parent=0
    #allocation3 [shape = 'u8[65536]{0}', space=vmem, size = 0x10000, scoped, tag = 'input window, operand 2, single buffered']
    #allocation4 [shape = 's32[1]{0}', space=sflag, size = 0x4, scoped, tag = 'scoped memory for tpu_custom_call.1']
    #allocation5 [shape = 's32[1]{0}', space=sflag, size = 0x4, scoped, tag = 'scoped memory for tpu_custom_call.1']
    #allocation6 [shape = 'u8[65536]{0}', space=vmem, size = 0x10000, scoped, tag = 'input window, operand 4, single buffered']
    #allocation7 [shape = 's32[1]{0}', space=sflag, size = 0x4, scoped, tag = 'scoped memory for tpu_custom_call.1']
    #allocation8 [shape = 'u8[32768]{0}', space=vmem, size = 0x8000, scoped, tag = 'output window, operand 0, single buffered']
    %11 = vsyncpa [#allocation4], 0
    %12 = vsyncpa [#allocation7], 0
    %13 = vsyncpa [#allocation5], 0
    // Predicated region
    $region2: #{tpu_custom_call.1} parent=1 // pred_check
      _
    $region3: #{tpu_custom_call.1} parent=1 // pred_check_branch
      %15 = sbr.rel (0) target = $region5
    $region4: #{tpu_custom_call.1} parent=1 // pred_region
      _
    $region5: #{tpu_custom_call.1} parent=1 // pred_fallthru
      _
    // Predicated region
    $region6: #{tpu_custom_call.1} parent=1 // pred_check
      _
    $region7: #{tpu_custom_call.1} parent=1 // pred_check_branch
      %17 = sbr.rel (0) target = $region9
    $region8: #{tpu_custom_call.1} parent=1 // pred_region
      _
    $region9: #{tpu_custom_call.1} parent=1 // pred_fallthru
      _
    // Predicated region
    $region10: #{tpu_custom_call.1} parent=1 // pred_check
      _
    $region11: #{tpu_custom_call.1} parent=1 // pred_check_branch
      %19 = sbr.rel (0) target = $region13
    $region12: #{tpu_custom_call.1} parent=1 // pred_region
      %21 = vsyncadd [#allocation4], 0
      %s22 = sshll.u32 %s2, 4
      %s23 = int_to_ptr.hbm [resolvable:$true] %s22
      %s24 = sshll.u32 [#allocation3], 4
      %s25 = int_to_ptr.vmem [resolvable:$true] %s24
      %30 = dma.hbm_to_vmem [thread:$0]  %s23, 2048, %s25, [#allocation4], 128, 128, 8
    $region13: #{tpu_custom_call.1} parent=1 // pred_fallthru
      _
    // Predicated region
    $region14: #{tpu_custom_call.1} parent=1 // pred_check
      _
    $region15: #{tpu_custom_call.1} parent=1 // pred_check_branch
      %32 = sbr.rel (0) target = $region17
    $region16: #{tpu_custom_call.1} parent=1 // pred_region
      _
    $region17: #{tpu_custom_call.1} parent=1 // pred_fallthru
      _
    // Predicated region
    $region18: #{tpu_custom_call.1} parent=1 // pred_check
      _
    $region19: #{tpu_custom_call.1} parent=1 // pred_check_branch
      %34 = sbr.rel (0) target = $region21
    $region20: #{tpu_custom_call.1} parent=1 // pred_region
      %36 = vsyncadd [#allocation7], 0
      %s37 = sshll.u32 %s4, 4
      %s38 = int_to_ptr.hbm [resolvable:$true] %s37
      %s39 = sshll.u32 [#allocation6], 4
      %s40 = int_to_ptr.vmem [resolvable:$true] %s39
      %45 = dma.hbm_to_vmem [thread:$0]  %s38, 2048, %s40, [#allocation7], 128, 128, 8
    $region21: #{tpu_custom_call.1} parent=1 // pred_fallthru
      _
    // Predicated region
    $region22: #{tpu_custom_call.1} parent=1 // pred_check
      _
    $region23: #{tpu_custom_call.1} parent=1 // pred_check_branch
      %47 = sbr.rel (0) target = $region25
    $region24: #{tpu_custom_call.1} parent=1 // pred_region
      _
    $region25: #{tpu_custom_call.1} parent=1 // pred_fallthru
      _
    // Predicated region
    $region26: #{tpu_custom_call.1} parent=1 // pred_check
      _
    $region27: #{tpu_custom_call.1} parent=1 // pred_check_branch
      %49 = sbr.rel (0) target = $region29
    $region28: #{tpu_custom_call.1} parent=1 // pred_region
      %51 = dma.done [#allocation4], 2048
    $region29: #{tpu_custom_call.1} parent=1 // pred_fallthru
      _
    // Predicated region
    $region30: #{tpu_custom_call.1} parent=1 // pred_check
      _
    $region31: #{tpu_custom_call.1} parent=1 // pred_check_branch
      %53 = sbr.rel (0) target = $region33
    $region32: #{tpu_custom_call.1} parent=1 // pred_region
      %55 = dma.done [#allocation7], 2048
    $region33: #{tpu_custom_call.1} parent=1 // pred_fallthru
      _
    %v56 = vld [vmem:[%s0] sm:$0xff]
    %v57 = vld [vmem:[%s0 + $0x8] sm:$0xff]
    %v58 = vld [vmem:[%s0 + $0x10] sm:$0xff]
    %v59 = vld [vmem:[%s0 + $0x18] sm:$0xff]
    %v60 = vld [vmem:[%s0 + $0x20] sm:$0xff]
    %v61 = vld [vmem:[%s0 + $0x28] sm:$0xff]
    %v62 = vld [vmem:[%s0 + $0x30] sm:$0xff]
    %v63 = vld [vmem:[%s0 + $0x38] sm:$0xff]
    %v64 = vld [vmem:[%s1] sm:$0xff]
    %v65 = vld [vmem:[%s1 + $0x8] sm:$0xff]
    %v66 = vld [vmem:[%s1 + $0x10] sm:$0xff]
    %v67 = vld [vmem:[%s1 + $0x18] sm:$0xff]
    %v68 = vld [vmem:[%s3] sm:$0x1]
    %v70 = vperm.slane %v68, 0
    %vm72 = vcmask 261120
    %v74 = vsel %vm72, %v56, 0
    %v77 = vsel %vm72, %v57, 0
    %v80 = vsel %vm72, %v58, 0
    %v83 = vsel %vm72, %v59, 0
    %v86 = vsel %vm72, %v60, 0
    %v89 = vsel %vm72, %v61, 0
    %v92 = vsel %vm72, %v62, 0
    %v95 = vsel %vm72, %v63, 0
    %97 = vmatpush.msra.mxu0 0.0
    %98 = vmatpush.msra.mxu0 0.0
    %99 = vmatpush.msra.mxu0 0.0
    %100 = vmatpush.msra.mxu0 0.0
    %101 = vmatpush.msra.mxu0 0.0
    %102 = vmatpush.msra.mxu0 0.0
    %103 = vmatpush.msra.mxu0 0.0
    %104 = vmatpush.msra.mxu0 0.0
    %105 = vmatpush.msra.mxu0 0.0
    %106 = vmatpush.msra.mxu0 0.0
    %107 = vmatpush.msra.mxu0 0.0
    %108 = vmatpush.msra.mxu0 0.0
    %109 = vmatpush.msra.mxu0 %v67
    %110 = vmatpush.msra.mxu0 %v66
    %111 = vmatpush.msra.mxu0 %v65
    %112 = vmatpush.msra.mxu0 %v64
    %113 = vmatmul.f32.gmra.mxu0 %v74
    %v114 = vpop.f32.mrf.mxu0
    %v115 = vadd.f32 %v70, %v114
    %116 = vmatmul.f32.gmra.mxu0 %v77
    %v117 = vpop.f32.mrf.mxu0
    %v118 = vadd.f32 %v70, %v117
    %119 = vmatmul.f32.gmra.mxu0 %v80
    %v120 = vpop.f32.mrf.mxu0
    %v121 = vadd.f32 %v70, %v120
    %122 = vmatmul.f32.gmra.mxu0 %v83
    %v123 = vpop.f32.mrf.mxu0
    %v124 = vadd.f32 %v70, %v123
    %125 = vmatmul.f32.gmra.mxu0 %v86
    %v126 = vpop.f32.mrf.mxu0
    %v127 = vadd.f32 %v70, %v126
    %128 = vmatmul.f32.gmra.mxu0 %v89
    %v129 = vpop.f32.mrf.mxu0
    %v130 = vadd.f32 %v70, %v129
    %131 = vmatmul.f32.gmra.mxu0 %v92
    %v132 = vpop.f32.mrf.mxu0
    %v133 = vadd.f32 %v70, %v132
    %134 = vmatmul.f32.gmra.mxu0 %v95
    %v135 = vpop.f32.mrf.mxu0
    %v136 = vadd.f32 %v70, %v135
    %137 = vdwg.mxu0
    %138 = vst [vmem:[#allocation2] sm:$0xff] %v115
    %139 = vst [vmem:[#allocation2 + $0x8] sm:$0xff] %v118
    %140 = vst [vmem:[#allocation2 + $0x10] sm:$0xff] %v121
    %141 = vst [vmem:[#allocation2 + $0x18] sm:$0xff] %v124
    %142 = vst [vmem:[#allocation2 + $0x20] sm:$0xff] %v127
    %143 = vst [vmem:[#allocation2 + $0x28] sm:$0xff] %v130
    %144 = vst [vmem:[#allocation2 + $0x30] sm:$0xff] %v133
    %145 = vst [vmem:[#allocation2 + $0x38] sm:$0xff] %v136
    %v146 = vld [vmem:[#allocation3] sm:$0xff]
    %v147 = vld [vmem:[#allocation3 + $0x8] sm:$0xff]
    %v148 = vld [vmem:[#allocation3 + $0x10] sm:$0xff]
    %v149 = vld [vmem:[#allocation3 + $0x18] sm:$0xff]
    %v150 = vld [vmem:[#allocation3 + $0x20] sm:$0xff]
    %v151 = vld [vmem:[#allocation3 + $0x28] sm:$0xff]
    %v152 = vld [vmem:[#allocation3 + $0x30] sm:$0xff]
    %v153 = vld [vmem:[#allocation3 + $0x38] sm:$0xff]
    %v154 = vld [vmem:[#allocation3 + $0x40] sm:$0xff]
    %v155 = vld [vmem:[#allocation3 + $0x48] sm:$0xff]
    %v156 = vld [vmem:[#allocation3 + $0x50] sm:$0xff]
    %v157 = vld [vmem:[#allocation3 + $0x58] sm:$0xff]
    %v158 = vld [vmem:[#allocation3 + $0x60] sm:$0xff]
    %v159 = vld [vmem:[#allocation3 + $0x68] sm:$0xff]
    %v160 = vld [vmem:[#allocation3 + $0x70] sm:$0xff]
    %v161 = vld [vmem:[#allocation3 + $0x78] sm:$0xff]
    %v162 = vld [vmem:[#allocation2] sm:$0xff]
    %163 = vmatpush.msra.mxu0 %v161
    %164 = vmatpush.msra.mxu0 %v160
    %165 = vmatpush.msra.mxu0 %v159
    %166 = vmatpush.msra.mxu0 %v158
    %167 = vmatpush.msra.mxu0 %v157
    %168 = vmatpush.msra.mxu0 %v156
    %169 = vmatpush.msra.mxu0 %v155
    %170 = vmatpush.msra.mxu0 %v154
    %171 = vmatpush.msra.mxu0 %v153
    %172 = vmatpush.msra.mxu0 %v152
    %173 = vmatpush.msra.mxu0 %v151
    %174 = vmatpush.msra.mxu0 %v150
    %175 = vmatpush.msra.mxu0 %v149
    %176 = vmatpush.msra.mxu0 %v148
    %177 = vmatpush.msra.mxu0 %v147
    %178 = vmatpush.msra.mxu0 %v146
    %179 = vmatmul.f32.gmra.mxu0 0.0
    %v180 = vpop.f32.mrf.mxu0
    %v181 = vadd.f32 0.0, %v180
    %182 = vdwg.mxu0
    %v183 = vadd.f32 %v162, %v181
    %v184 = vtanh.pop %v183
    %185 = vst [vmem:[#allocation2] sm:$0xff] %v184
    %s186 = scalar_lea.vmem [#allocation2], 8
    %v187 = vld [vmem:[%s186] sm:$0xff]
    %188 = vmatpush.msra.mxu0 %v161
    %189 = vmatpush.msra.mxu0 %v160
    %190 = vmatpush.msra.mxu0 %v159
    %191 = vmatpush.msra.mxu0 %v158
    %192 = vmatpush.msra.mxu0 %v157
    %193 = vmatpush.msra.mxu0 %v156
    %194 = vmatpush.msra.mxu0 %v155
    %195 = vmatpush.msra.mxu0 %v154
    %196 = vmatpush.msra.mxu0 %v153
    %197 = vmatpush.msra.mxu0 %v152
    %198 = vmatpush.msra.mxu0 %v151
    %199 = vmatpush.msra.mxu0 %v150
    %200 = vmatpush.msra.mxu0 %v149
    %201 = vmatpush.msra.mxu0 %v148
    %202 = vmatpush.msra.mxu0 %v147
    %203 = vmatpush.msra.mxu0 %v146
    %204 = vmatmul.f32.gmra.mxu0 %v184
    %v205 = vpop.f32.mrf.mxu0
    %v206 = vadd.f32 0.0, %v205
    %207 = vdwg.mxu0
    %v208 = vadd.f32 %v187, %v206
    %v209 = vtanh.pop %v208
    %210 = vst [vmem:[%s186] sm:$0xff] %v209
    %s211 = scalar_lea.vmem [#allocation2], 16
    %v212 = vld [vmem:[%s211] sm:$0xff]
    %213 = vmatpush.msra.mxu0 %v161
    %214 = vmatpush.msra.mxu0 %v160
    %215 = vmatpush.msra.mxu0 %v159
    %216 = vmatpush.msra.mxu0 %v158
    %217 = vmatpush.msra.mxu0 %v157
    %218 = vmatpush.msra.mxu0 %v156
    %219 = vmatpush.msra.mxu0 %v155
    %220 = vmatpush.msra.mxu0 %v154
    %221 = vmatpush.msra.mxu0 %v153
    %222 = vmatpush.msra.mxu0 %v152
    %223 = vmatpush.msra.mxu0 %v151
    %224 = vmatpush.msra.mxu0 %v150
    %225 = vmatpush.msra.mxu0 %v149
    %226 = vmatpush.msra.mxu0 %v148
    %227 = vmatpush.msra.mxu0 %v147
    %228 = vmatpush.msra.mxu0 %v146
    %229 = vmatmul.f32.gmra.mxu0 %v209
    %v230 = vpop.f32.mrf.mxu0
    %v231 = vadd.f32 0.0, %v230
    %232 = vdwg.mxu0
    %v233 = vadd.f32 %v212, %v231
    %v234 = vtanh.pop %v233
    %235 = vst [vmem:[%s211] sm:$0xff] %v234
    %s236 = scalar_lea.vmem [#allocation2], 24
    %v237 = vld [vmem:[%s236] sm:$0xff]
    %238 = vmatpush.msra.mxu0 %v161
    %239 = vmatpush.msra.mxu0 %v160
    %240 = vmatpush.msra.mxu0 %v159
    %241 = vmatpush.msra.mxu0 %v158
    %242 = vmatpush.msra.mxu0 %v157
    %243 = vmatpush.msra.mxu0 %v156
    %244 = vmatpush.msra.mxu0 %v155
    %245 = vmatpush.msra.mxu0 %v154
    %246 = vmatpush.msra.mxu0 %v153
    %247 = vmatpush.msra.mxu0 %v152
    %248 = vmatpush.msra.mxu0 %v151
    %249 = vmatpush.msra.mxu0 %v150
    %250 = vmatpush.msra.mxu0 %v149
    %251 = vmatpush.msra.mxu0 %v148
    %252 = vmatpush.msra.mxu0 %v147
    %253 = vmatpush.msra.mxu0 %v146
    %254 = vmatmul.f32.gmra.mxu0 %v234
    %v255 = vpop.f32.mrf.mxu0
    %v256 = vadd.f32 0.0, %v255
    %257 = vdwg.mxu0
    %v258 = vadd.f32 %v237, %v256
    %v259 = vtanh.pop %v258
    %260 = vst [vmem:[%s236] sm:$0xff] %v259
    %s261 = scalar_lea.vmem [#allocation2], 32
    %v262 = vld [vmem:[%s261] sm:$0xff]
    %263 = vmatpush.msra.mxu0 %v161
    %264 = vmatpush.msra.mxu0 %v160
    %265 = vmatpush.msra.mxu0 %v159
    %266 = vmatpush.msra.mxu0 %v158
    %267 = vmatpush.msra.mxu0 %v157
    %268 = vmatpush.msra.mxu0 %v156
    %269 = vmatpush.msra.mxu0 %v155
    %270 = vmatpush.msra.mxu0 %v154
    %271 = vmatpush.msra.mxu0 %v153
    %272 = vmatpush.msra.mxu0 %v152
    %273 = vmatpush.msra.mxu0 %v151
    %274 = vmatpush.msra.mxu0 %v150
    %275 = vmatpush.msra.mxu0 %v149
    %276 = vmatpush.msra.mxu0 %v148
    %277 = vmatpush.msra.mxu0 %v147
    %278 = vmatpush.msra.mxu0 %v146
    %279 = vmatmul.f32.gmra.mxu0 %v259
    %v280 = vpop.f32.mrf.mxu0
    %v281 = vadd.f32 0.0, %v280
    %282 = vdwg.mxu0
    %v283 = vadd.f32 %v262, %v281
    %v284 = vtanh.pop %v283
    %285 = vst [vmem:[%s261] sm:$0xff] %v284
    %s286 = scalar_lea.vmem [#allocation2], 40
    %v287 = vld [vmem:[%s286] sm:$0xff]
    %288 = vmatpush.msra.mxu0 %v161
    %289 = vmatpush.msra.mxu0 %v160
    %290 = vmatpush.msra.mxu0 %v159
    %291 = vmatpush.msra.mxu0 %v158
    %292 = vmatpush.msra.mxu0 %v157
    %293 = vmatpush.msra.mxu0 %v156
    %294 = vmatpush.msra.mxu0 %v155
    %295 = vmatpush.msra.mxu0 %v154
    %296 = vmatpush.msra.mxu0 %v153
    %297 = vmatpush.msra.mxu0 %v152
    %298 = vmatpush.msra.mxu0 %v151
    %299 = vmatpush.msra.mxu0 %v150
    %300 = vmatpush.msra.mxu0 %v149
    %301 = vmatpush.msra.mxu0 %v148
    %302 = vmatpush.msra.mxu0 %v147
    %303 = vmatpush.msra.mxu0 %v146
    %304 = vmatmul.f32.gmra.mxu0 %v284
    %v305 = vpop.f32.mrf.mxu0
    %v306 = vadd.f32 0.0, %v305
    %307 = vdwg.mxu0
    %v308 = vadd.f32 %v287, %v306
    %v309 = vtanh.pop %v308
    %310 = vst [vmem:[%s286] sm:$0xff] %v309
    %s311 = scalar_lea.vmem [#allocation2], 48
    %v312 = vld [vmem:[%s311] sm:$0xff]
    %313 = vmatpush.msra.mxu0 %v161
    %314 = vmatpush.msra.mxu0 %v160
    %315 = vmatpush.msra.mxu0 %v159
    %316 = vmatpush.msra.mxu0 %v158
    %317 = vmatpush.msra.mxu0 %v157
    %318 = vmatpush.msra.mxu0 %v156
    %319 = vmatpush.msra.mxu0 %v155
    %320 = vmatpush.msra.mxu0 %v154
    %321 = vmatpush.msra.mxu0 %v153
    %322 = vmatpush.msra.mxu0 %v152
    %323 = vmatpush.msra.mxu0 %v151
    %324 = vmatpush.msra.mxu0 %v150
    %325 = vmatpush.msra.mxu0 %v149
    %326 = vmatpush.msra.mxu0 %v148
    %327 = vmatpush.msra.mxu0 %v147
    %328 = vmatpush.msra.mxu0 %v146
    %329 = vmatmul.f32.gmra.mxu0 %v309
    %v330 = vpop.f32.mrf.mxu0
    %v331 = vadd.f32 0.0, %v330
    %332 = vdwg.mxu0
    %v333 = vadd.f32 %v312, %v331
    %v334 = vtanh.pop %v333
    %335 = vst [vmem:[%s311] sm:$0xff] %v334
    %s336 = scalar_lea.vmem [#allocation2], 56
    %v337 = vld [vmem:[%s336] sm:$0xff]
    %338 = vmatpush.msra.mxu0 %v161
    %339 = vmatpush.msra.mxu0 %v160
    %340 = vmatpush.msra.mxu0 %v159
    %341 = vmatpush.msra.mxu0 %v158
    %342 = vmatpush.msra.mxu0 %v157
    %343 = vmatpush.msra.mxu0 %v156
    %344 = vmatpush.msra.mxu0 %v155
    %345 = vmatpush.msra.mxu0 %v154
    %346 = vmatpush.msra.mxu0 %v153
    %347 = vmatpush.msra.mxu0 %v152
    %348 = vmatpush.msra.mxu0 %v151
    %349 = vmatpush.msra.mxu0 %v150
    %350 = vmatpush.msra.mxu0 %v149
    %351 = vmatpush.msra.mxu0 %v148
    %352 = vmatpush.msra.mxu0 %v147
    %353 = vmatpush.msra.mxu0 %v146
    %354 = vmatmul.f32.gmra.mxu0 %v334
    %v355 = vpop.f32.mrf.mxu0
    %v356 = vadd.f32 0.0, %v355
    %357 = vdwg.mxu0
    %v358 = vadd.f32 %v337, %v356
    %v359 = vtanh.pop %v358
    %360 = vst [vmem:[%s336] sm:$0xff] %v359
    %v361 = vld [vmem:[#allocation2] sm:$0xff]
    %v362 = vld [vmem:[#allocation2 + $0x8] sm:$0xff]
    %v363 = vld [vmem:[#allocation2 + $0x10] sm:$0xff]
    %v364 = vld [vmem:[#allocation2 + $0x18] sm:$0xff]
    %v365 = vld [vmem:[#allocation2 + $0x20] sm:$0xff]
    %v366 = vld [vmem:[#allocation2 + $0x28] sm:$0xff]
    %v367 = vld [vmem:[#allocation2 + $0x30] sm:$0xff]
    %v368 = vld [vmem:[#allocation2 + $0x38] sm:$0xff]
    %v369 = vld [vmem:[#allocation6] sm:$0xff]
    %v370 = vld [vmem:[#allocation6 + $0x8] sm:$0xff]
    %v371 = vld [vmem:[#allocation6 + $0x10] sm:$0xff]
    %v372 = vld [vmem:[#allocation6 + $0x18] sm:$0xff]
    %v373 = vld [vmem:[#allocation6 + $0x20] sm:$0xff]
    %v374 = vld [vmem:[#allocation6 + $0x28] sm:$0xff]
    %v375 = vld [vmem:[#allocation6 + $0x30] sm:$0xff]
    %v376 = vld [vmem:[#allocation6 + $0x38] sm:$0xff]
    %v377 = vld [vmem:[#allocation6 + $0x40] sm:$0xff]
    %v378 = vld [vmem:[#allocation6 + $0x48] sm:$0xff]
    %v379 = vld [vmem:[#allocation6 + $0x50] sm:$0xff]
    %v380 = vld [vmem:[#allocation6 + $0x58] sm:$0xff]
    %v381 = vld [vmem:[#allocation6 + $0x60] sm:$0xff]
    %v382 = vld [vmem:[#allocation6 + $0x68] sm:$0xff]
    %v383 = vld [vmem:[#allocation6 + $0x70] sm:$0xff]
    %v384 = vld [vmem:[#allocation6 + $0x78] sm:$0xff]
    %v385 = vld [vmem:[%s5] sm:$0x1]
    %v387 = vperm.slane %v385, 0
    %389 = vmatpush.msra.mxu0 %v384
    %390 = vmatpush.msra.mxu0 %v383
    %391 = vmatpush.msra.mxu0 %v382
    %392 = vmatpush.msra.mxu0 %v381
    %393 = vmatpush.msra.mxu0 %v380
    %394 = vmatpush.msra.mxu0 %v379
    %395 = vmatpush.msra.mxu0 %v378
    %396 = vmatpush.msra.mxu0 %v377
    %397 = vmatpush.msra.mxu0 %v376
    %398 = vmatpush.msra.mxu0 %v375
    %399 = vmatpush.msra.mxu0 %v374
    %400 = vmatpush.msra.mxu0 %v373
    %401 = vmatpush.msra.mxu0 %v372
    %402 = vmatpush.msra.mxu0 %v371
    %403 = vmatpush.msra.mxu0 %v370
    %404 = vmatpush.msra.mxu0 %v369
    %405 = vmatmul.f32.gmra.mxu0 %v361
    %v406 = vpop.f32.mrf.mxu0
    %v407 = vadd.f32 %v387, %v406
    %408 = vmatmul.f32.gmra.mxu0 %v362
    %v409 = vpop.f32.mrf.mxu0
    %v410 = vadd.f32 %v387, %v409
    %411 = vmatmul.f32.gmra.mxu0 %v363
    %v412 = vpop.f32.mrf.mxu0
    %v413 = vadd.f32 %v387, %v412
    %414 = vmatmul.f32.gmra.mxu0 %v364
    %v415 = vpop.f32.mrf.mxu0
    %v416 = vadd.f32 %v387, %v415
    %417 = vmatmul.f32.gmra.mxu0 %v365
    %v418 = vpop.f32.mrf.mxu0
    %v419 = vadd.f32 %v387, %v418
    %420 = vmatmul.f32.gmra.mxu0 %v366
    %v421 = vpop.f32.mrf.mxu0
    %v422 = vadd.f32 %v387, %v421
    %423 = vmatmul.f32.gmra.mxu0 %v367
    %v424 = vpop.f32.mrf.mxu0
    %v425 = vadd.f32 %v387, %v424
    %426 = vmatmul.f32.gmra.mxu0 %v368
    %v427 = vpop.f32.mrf.mxu0
    %v428 = vadd.f32 %v387, %v427
    %429 = vdwg.mxu0
    %430 = vmax.xlane.f32.xlu0 %v407
    %v431 = vpop.xlane.xlu0 %430
    %432 = vmax.xlane.f32.xlu0 %v410
    %v433 = vpop.xlane.xlu0 %432
    %434 = vmax.xlane.f32.xlu0 %v413
    %v435 = vpop.xlane.xlu0 %434
    %436 = vmax.xlane.f32.xlu0 %v416
    %v437 = vpop.xlane.xlu0 %436
    %438 = vmax.xlane.f32.xlu0 %v419
    %v439 = vpop.xlane.xlu0 %438
    %440 = vmax.xlane.f32.xlu0 %v422
    %v441 = vpop.xlane.xlu0 %440
    %442 = vmax.xlane.f32.xlu0 %v425
    %v443 = vpop.xlane.xlu0 %442
    %444 = vmax.xlane.f32.xlu0 %v428
    %v445 = vpop.xlane.xlu0 %444
    %v446 = vsub.f32 %v407, %v431
    %v447 = vsub.f32 %v410, %v433
    %v448 = vsub.f32 %v413, %v435
    %v449 = vsub.f32 %v416, %v437
    %v450 = vsub.f32 %v419, %v439
    %v451 = vsub.f32 %v422, %v441
    %v452 = vsub.f32 %v425, %v443
    %v453 = vsub.f32 %v428, %v445
    %v454 = vmul.f32 %v446, 1.442695
    %v455 = vpow.pop %v454
    %v456 = vmul.f32 %v447, 1.442695
    %v457 = vpow.pop %v456
    %v458 = vmul.f32 %v448, 1.442695
    %v459 = vpow.pop %v458
    %v460 = vmul.f32 %v449, 1.442695
    %v461 = vpow.pop %v460
    %v462 = vmul.f32 %v450, 1.442695
    %v463 = vpow.pop %v462
    %v464 = vmul.f32 %v451, 1.442695
    %v465 = vpow.pop %v464
    %v466 = vmul.f32 %v452, 1.442695
    %v467 = vpow.pop %v466
    %v468 = vmul.f32 %v453, 1.442695
    %v469 = vpow.pop %v468
    %470 = vadd.xlane.f32.xlu0 %v455
    %v471 = vpop.xlane.xlu0 %470
    %472 = vadd.xlane.f32.xlu0 %v457
    %v473 = vpop.xlane.xlu0 %472
    %474 = vadd.xlane.f32.xlu0 %v459
    %v475 = vpop.xlane.xlu0 %474
    %476 = vadd.xlane.f32.xlu0 %v461
    %v477 = vpop.xlane.xlu0 %476
    %478 = vadd.xlane.f32.xlu0 %v463
    %v479 = vpop.xlane.xlu0 %478
    %480 = vadd.xlane.f32.xlu0 %v465
    %v481 = vpop.xlane.xlu0 %480
    %482 = vadd.xlane.f32.xlu0 %v467
    %v483 = vpop.xlane.xlu0 %482
    %484 = vadd.xlane.f32.xlu0 %v469
    %v485 = vpop.xlane.xlu0 %484
    %v486 = vrcp.pop %v471
    %v487 = vmul.f32 %v471, %v486
    %v488 = vsub.f32 1.0, %v487
    %v489 = vmul.f32 %v486, %v488
    %v490 = vadd.f32 %v486, %v489
    %vm491 = vweird.f32 %v471
    %vm492 = vweird.f32 %v486
    %vm493 = vmor %vm491, %vm492
    %v494 = vsel %vm493, %v486, %v490
    %v495 = vand.u32 2147483647, %v471
    %vm496 = vcmp.eq.f32.partialorder %v495, 8.507059e+37
    %v497 = vand.u32 %v471, 2147483648
    %v498 = vor.u32 1.1754944e-38, %v497
    %v499 = vsel %vm496, %v498, %v494
    %v500 = vmul.f32 %v455, %v499
    %v501 = vrcp.pop %v473
    %v502 = vmul.f32 %v473, %v501
    %v503 = vsub.f32 1.0, %v502
    %v504 = vmul.f32 %v501, %v503
    %v505 = vadd.f32 %v501, %v504
    %vm506 = vweird.f32 %v473
    %vm507 = vweird.f32 %v501
    %vm508 = vmor %vm506, %vm507
    %v509 = vsel %vm508, %v501, %v505
    %v510 = vand.u32 2147483647, %v473
    %vm511 = vcmp.eq.f32.partialorder %v510, 8.507059e+37
    %v512 = vand.u32 %v473, 2147483648
    %v513 = vor.u32 1.1754944e-38, %v512
    %v514 = vsel %vm511, %v513, %v509
    %v515 = vmul.f32 %v457, %v514
    %v516 = vrcp.pop %v475
    %v517 = vmul.f32 %v475, %v516
    %v518 = vsub.f32 1.0, %v517
    %v519 = vmul.f32 %v516, %v518
    %v520 = vadd.f32 %v516, %v519
    %vm521 = vweird.f32 %v475
    %vm522 = vweird.f32 %v516
    %vm523 = vmor %vm521, %vm522
    %v524 = vsel %vm523, %v516, %v520
    %v525 = vand.u32 2147483647, %v475
    %vm526 = vcmp.eq.f32.partialorder %v525, 8.507059e+37
    %v527 = vand.u32 %v475, 2147483648
    %v528 = vor.u32 1.1754944e-38, %v527
    %v529 = vsel %vm526, %v528, %v524
    %v530 = vmul.f32 %v459, %v529
    %v531 = vrcp.pop %v477
    %v532 = vmul.f32 %v477, %v531
    %v533 = vsub.f32 1.0, %v532
    %v534 = vmul.f32 %v531, %v533
    %v535 = vadd.f32 %v531, %v534
    %vm536 = vweird.f32 %v477
    %vm537 = vweird.f32 %v531
    %vm538 = vmor %vm536, %vm537
    %v539 = vsel %vm538, %v531, %v535
    %v540 = vand.u32 2147483647, %v477
    %vm541 = vcmp.eq.f32.partialorder %v540, 8.507059e+37
    %v542 = vand.u32 %v477, 2147483648
    %v543 = vor.u32 1.1754944e-38, %v542
    %v544 = vsel %vm541, %v543, %v539
    %v545 = vmul.f32 %v461, %v544
    %v546 = vrcp.pop %v479
    %v547 = vmul.f32 %v479, %v546
    %v548 = vsub.f32 1.0, %v547
    %v549 = vmul.f32 %v546, %v548
    %v550 = vadd.f32 %v546, %v549
    %vm551 = vweird.f32 %v479
    %vm552 = vweird.f32 %v546
    %vm553 = vmor %vm551, %vm552
    %v554 = vsel %vm553, %v546, %v550
    %v555 = vand.u32 2147483647, %v479
    %vm556 = vcmp.eq.f32.partialorder %v555, 8.507059e+37
    %v557 = vand.u32 %v479, 2147483648
    %v558 = vor.u32 1.1754944e-38, %v557
    %v559 = vsel %vm556, %v558, %v554
    %v560 = vmul.f32 %v463, %v559
    %v561 = vrcp.pop %v481
    %v562 = vmul.f32 %v481, %v561
    %v563 = vsub.f32 1.0, %v562
    %v564 = vmul.f32 %v561, %v563
    %v565 = vadd.f32 %v561, %v564
    %vm566 = vweird.f32 %v481
    %vm567 = vweird.f32 %v561
    %vm568 = vmor %vm566, %vm567
    %v569 = vsel %vm568, %v561, %v565
    %v570 = vand.u32 2147483647, %v481
    %vm571 = vcmp.eq.f32.partialorder %v570, 8.507059e+37
    %v572 = vand.u32 %v481, 2147483648
    %v573 = vor.u32 1.1754944e-38, %v572
    %v574 = vsel %vm571, %v573, %v569
    %v575 = vmul.f32 %v465, %v574
    %v576 = vrcp.pop %v483
    %v577 = vmul.f32 %v483, %v576
    %v578 = vsub.f32 1.0, %v577
    %v579 = vmul.f32 %v576, %v578
    %v580 = vadd.f32 %v576, %v579
    %vm581 = vweird.f32 %v483
    %vm582 = vweird.f32 %v576
    %vm583 = vmor %vm581, %vm582
    %v584 = vsel %vm583, %v576, %v580
    %v585 = vand.u32 2147483647, %v483
    %vm586 = vcmp.eq.f32.partialorder %v585, 8.507059e+37
    %v587 = vand.u32 %v483, 2147483648
    %v588 = vor.u32 1.1754944e-38, %v587
    %v589 = vsel %vm586, %v588, %v584
    %v590 = vmul.f32 %v467, %v589
    %v591 = vrcp.pop %v485
    %v592 = vmul.f32 %v485, %v591
    %v593 = vsub.f32 1.0, %v592
    %v594 = vmul.f32 %v591, %v593
    %v595 = vadd.f32 %v591, %v594
    %vm596 = vweird.f32 %v485
    %vm597 = vweird.f32 %v591
    %vm598 = vmor %vm596, %vm597
    %v599 = vsel %vm598, %v591, %v595
    %v600 = vand.u32 2147483647, %v485
    %vm601 = vcmp.eq.f32.partialorder %v600, 8.507059e+37
    %v602 = vand.u32 %v485, 2147483648
    %v603 = vor.u32 1.1754944e-38, %v602
    %v604 = vsel %vm601, %v603, %v599
    %v605 = vmul.f32 %v469, %v604
    %606 = vst [vmem:[#allocation8] sm:$0xff] %v500
    %607 = vst [vmem:[#allocation8 + $0x8] sm:$0xff] %v515
    %608 = vst [vmem:[#allocation8 + $0x10] sm:$0xff] %v530
    %609 = vst [vmem:[#allocation8 + $0x18] sm:$0xff] %v545
    %610 = vst [vmem:[#allocation8 + $0x20] sm:$0xff] %v560
    %611 = vst [vmem:[#allocation8 + $0x28] sm:$0xff] %v575
    %612 = vst [vmem:[#allocation8 + $0x30] sm:$0xff] %v590
    %613 = vst [vmem:[#allocation8 + $0x38] sm:$0xff] %v605
    // Predicated region
    $region34: #{tpu_custom_call.1} parent=1 // pred_check
      _
    $region35: #{tpu_custom_call.1} parent=1 // pred_check_branch
      %615 = sbr.rel (0) target = $region37
    $region36: #{tpu_custom_call.1} parent=1 // pred_region
      %617 = vsyncadd [#allocation5], 0
      %s618 = sshll.u32 [#allocation8], 4
      %s619 = int_to_ptr.vmem [resolvable:$true] %s618
      %s620 = sshll.u32 %s6, 4
      %s621 = int_to_ptr.hbm [resolvable:$true] %s620
      %626 = dma.vmem_to_hbm [thread:$0]  %s619, 1024, %s621, [#allocation5], 128, 128, 8
    $region37: #{tpu_custom_call.1} parent=1 // pred_fallthru
      _
    // Predicated region
    $region38: #{tpu_custom_call.1} parent=1 // pred_check
      _
    $region39: #{tpu_custom_call.1} parent=1 // pred_check_branch
      %628 = sbr.rel (0) target = $region41
    $region40: #{tpu_custom_call.1} parent=1 // pred_region
      %630 = dma.done [#allocation5], 1024
    $region41: #{tpu_custom_call.1} parent=1 // pred_fallthru
      _
    %631 = vsyncpa [#allocation4], 1
    %632 = vsyncpa [#allocation7], 1
    %633 = vsyncpa [#allocation5], 1

</llo_original>
